<compile_context>
chip_gen: v7x
topology: tpu7x:2x2x1
jax: 0.10.0
libtpu: 0.0.40
codegen_flags: <defaults>
</compile_context>

<pallas_src>
import functools

import jax
import jax.numpy as jnp
from jax import lax
from jax.experimental import pallas as pl
from jax.experimental.pallas import tpu as pltpu


def channel_attention_kernel(x_ref, w1t_ref, w2t_ref, o_ref, *, valid_l):
    # x_ref: (TB, C, Lp); w1t_ref: (C, C_hid); w2t_ref: (C_hid, C); o_ref: (TB, C, Lp)
    x = x_ref[...]                    # storage dtype; never upcast block-wide
    tb = x.shape[0]
    lp = x.shape[-1]

    # Adaptive avg pool (output length 1) == f32-accumulated sum over lanes.
    # Any zero-padding along L contributes nothing to the sum.
    avg = jnp.sum(x, axis=-1, dtype=jnp.float32) * jnp.float32(1.0 / valid_l)

    # Adaptive max pool: reduce in the storage dtype (exact, max is monotonic)
    # and upcast only the tiny (TB, C) result.  Mask out any L-padding.
    if lp != valid_l:
        lane = lax.broadcasted_iota(jnp.int32, x.shape, 2)
        xm = jnp.where(lane < valid_l, x, jnp.finfo(x.dtype).min)
    else:
        xm = x
    mx = jnp.max(xm, axis=-1).astype(jnp.float32)      # (TB, C)

    # Shared bottleneck MLP batched over avg+max rows of every sample in the
    # block: (2*TB, C) -> (2*TB, C_hid) -> (2*TB, C).
    pooled = jnp.concatenate([avg, mx], axis=0)
    h = jnp.maximum(
        jnp.dot(pooled, w1t_ref[...], preferred_element_type=jnp.float32), 0.0)
    out = jnp.dot(h, w2t_ref[...], preferred_element_type=jnp.float32)

    att = jax.nn.sigmoid(out[:tb] + out[tb:])          # (TB, C) f32

    # Gate the original storage-dtype block directly; only the tiny gate is
    # cast, never the block.
    o_ref[...] = att.astype(o_ref.dtype)[:, :, None] * x_ref[...]


def _tpu_kind():
    try:
        return jax.devices()[0].device_kind.lower()
    except Exception:
        return ""


def _block_config():
    """(block_bytes, vmem_limit_bytes, two_tensorcores) per TPU generation."""
    kind = _tpu_kind()
    if "v7" in kind:
        return 6 << 20, 40 << 20, True     # 64 MiB physical VMEM per TC, 2 TCs
    if "v6" in kind:
        return 4 << 20, 48 << 20, False    # 128 MiB physical, 1 TC
    return 2 << 20, 32 << 20, False        # v5e / unknown: conservative


def _choose_block_batch(b, per_sample_bytes, target_bytes, two_cores):
    """Pick the per-step batch tile TB and the (possibly padded) batch size."""
    cap = max(1, min(b, target_bytes // max(1, per_sample_bytes)))
    divisors = [d for d in range(1, cap + 1) if b % d == 0]
    tb = max(divisors)
    if 2 * tb <= cap:
        # Exact divisors waste more than half the block budget (prime-ish B):
        # size blocks near the cap and pad the batch instead of collapsing to
        # tiny (e.g. 32 KiB) blocks.
        steps = -(-b // cap)
        tb = -(-b // steps)
    if two_cores:
        # Prefer an even grid-step count so both v7x TensorCores get work,
        # without shrinking blocks below half the budget or adding padding.
        steps = -(-b // tb)
        if steps % 2 == 1:
            even = [d for d in divisors if (b // d) % 2 == 0 and 2 * d >= tb]
            if even:
                tb = max(even)
            elif steps == 1 and b > 1:
                tb = -(-b // 2)            # split a single step across both cores
    b_pad = -(-b // tb) * tb
    return tb, b_pad


@jax.jit
def channel_attention(x, w1, w2):
    """x: (B, C, L); w1: (C_hid, C) [fc1 weight]; w2: (C, C_hid) [fc2 weight]."""
    B, C, L = x.shape
    C_hid = w1.shape[0]
    block_bytes, vmem_limit, two_cores = _block_config()

    # Lane-dense output: pad L up to a multiple of 128 so stores are unmasked.
    Lp = L if L % 128 == 0 else (-(-L // 128)) * 128

    TB, Bp = _choose_block_batch(
        B, C * Lp * x.dtype.itemsize, block_bytes, two_cores)
    if (Bp, Lp) != (B, L):
        x = jnp.pad(x, ((0, Bp - B), (0, 0), (0, Lp - L)))
    grid = (Bp // TB,)

    # Pre-transpose the tiny weights once so both in-kernel matmuls contract
    # last-of-LHS with first-of-RHS (no per-step relayout in the kernel).
    w1t = w1.T     # (C, C_hid)
    w2t = w2.T     # (C_hid, C)

    itemsize = x.dtype.itemsize
    cost = pl.CostEstimate(
        flops=int(3 * Bp * C * Lp + 8 * Bp * C * C_hid),
        transcendentals=int(Bp * C),
        bytes_accessed=int(2 * Bp * C * Lp * itemsize + 2 * C * C_hid * 4),
    )

    out = pl.pallas_call(
        functools.partial(channel_attention_kernel, valid_l=L),
        out_shape=jax.ShapeDtypeStruct((Bp, C, Lp), x.dtype),
        grid_spec=pltpu.PrefetchScalarGridSpec(
            num_scalar_prefetch=0,
            grid=grid,
            in_specs=[
                pl.BlockSpec((TB, C, Lp), lambda b: (b, 0, 0)),
                pl.BlockSpec((C, C_hid), lambda b: (0, 0)),   # weights stay resident
                pl.BlockSpec((C_hid, C), lambda b: (0, 0)),
            ],
            out_specs=pl.BlockSpec((TB, C, Lp), lambda b: (b, 0, 0)),
        ),
        compiler_params=pltpu.CompilerParams(
            dimension_semantics=("parallel",),
            vmem_limit_bytes=vmem_limit,
        ),
        cost_estimate=cost,
    )(x, w1t, w2t)

    if (Bp, Lp) != (B, L):
        out = out[:B, :, :L]
    return out


def channel_attention_ref(x, w1, w2):
    # Pure-JAX reference mirroring the PyTorch forward.
    avg = jnp.mean(x, axis=-1, keepdims=True)                       # (B, C, 1)
    mx = jnp.max(x, axis=-1, keepdims=True)                         # (B, C, 1)

    def mlp(p):                                                     # p: (B, C, 1)
        h = jnp.maximum(jnp.einsum('oc,bcl->bol', w1, p), 0.0)
        return jnp.einsum('co,bol->bcl', w2, h)

    out = mlp(avg) + mlp(mx)                                        # (B, C, 1)
    return jax.nn.sigmoid(out) * x


if __name__ == "__main__":
    C, L = 64, 128              # in_planes = 64 -> hidden = 64 // 16 = 4
    C_hid = C // 16

    key = jax.random.PRNGKey(0)
    kx, k1, k2, kx2, kx3 = jax.random.split(key, 5)

    # Deterministic synthetic weights for fc1 / fc2 (1x1 convs, no bias).
    w1 = 0.1 * jax.random.normal(k1, (C_hid, C), dtype=jnp.float32)
    w2 = 0.1 * jax.random.normal(k2, (C, C_hid), dtype=jnp.float32)

    # Small case.
    x = jax.random.normal(kx, (2, C, L), dtype=jnp.float32)
    out = jax.block_until_ready(channel_attention(x, w1, w2))
    ref = channel_attention_ref(x, w1, w2)
    assert out.shape == x.shape
    assert jnp.allclose(out, ref, atol=1e-5, rtol=1e-5)

    # Larger batch to exercise the multi-sample block path.
    x2 = jax.random.normal(kx2, (8, C, L), dtype=jnp.float32)
    out2 = jax.block_until_ready(channel_attention(x2, w1, w2))
    assert jnp.allclose(out2, channel_attention_ref(x2, w1, w2),
                        atol=1e-5, rtol=1e-5)

    # Awkward batch (odd B) + non-128-aligned L: exercises the padding paths.
    x3 = jax.random.normal(kx3, (3, C, 96), dtype=jnp.float32)
    out3 = jax.block_until_ready(channel_attention(x3, w1, w2))
    assert out3.shape == x3.shape
    assert jnp.allclose(out3, channel_attention_ref(x3, w1, w2),
                        atol=1e-5, rtol=1e-5)

    print("KERNEL_OK")
</pallas_src>

<mosaic_0001>
module attributes {stable_mosaic.version = 11 : i64} {
  func.func @channel_attention_kernel(%arg0: i32, %arg1: memref<2x64x128xf32, #tpu.memory_space<vmem>>, %arg2: memref<64x4xf32, #tpu.memory_space<vmem>>, %arg3: memref<4x64xf32, #tpu.memory_space<vmem>>, %arg4: memref<2x64x128xf32, #tpu.memory_space<vmem>>) attributes {dimension_semantics = [#tpu.dimension_semantics<parallel>], iteration_bounds = array<i64: 1>, scalar_prefetch = 0 : i64, scratch_operands = 0 : i64, tpu.core_type = #tpu.core_type<tc>, window_params = [{transform_indices = @transform_0, window_bounds = array<i64: 2, 64, 128>}, {pipeline_mode = #tpu.pipeline_mode<synchronous>, transform_indices = @transform_1, window_bounds = array<i64: 64, 4>}, {pipeline_mode = #tpu.pipeline_mode<synchronous>, transform_indices = @transform_2, window_bounds = array<i64: 4, 64>}, {transform_indices = @transform_3, window_bounds = array<i64: 2, 64, 128>}]} {
    %c0 = arith.constant 0 : index
    %c0_0 = arith.constant 0 : index
    %c0_1 = arith.constant 0 : index
    %0 = vector.load %arg1[%c0, %c0_0, %c0_1] : memref<2x64x128xf32, #tpu.memory_space<vmem>>, vector<2x64x128xf32>
    %cst = arith.constant dense<0.000000e+00> : vector<2x64xf32>
    %1 = vector.multi_reduction <add>, %0, %cst [2] : vector<2x64x128xf32> to vector<2x64xf32>
    %cst_2 = arith.constant 7.812500e-03 : f32
    %2 = vector.broadcast %cst_2 : f32 to vector<2x64xf32>
    %3 = arith.mulf %1, %2 : vector<2x64xf32>
    %cst_3 = arith.constant dense<0xFF800000> : vector<2x64xf32>
    %4 = vector.multi_reduction <maximumf>, %0, %cst_3 [2] : vector<2x64x128xf32> to vector<2x64xf32>
    %5 = tpu.concatenate %3, %4 in 0 : vector<2x64xf32>, vector<2x64xf32> -> vector<4x64xf32>
    %c0_4 = arith.constant 0 : index
    %c0_5 = arith.constant 0 : index
    %6 = vector.load %arg2[%c0_4, %c0_5] : memref<64x4xf32, #tpu.memory_space<vmem>>, vector<64x4xf32>
    %cst_6 = arith.constant dense<0.000000e+00> : vector<4x4xf32>
    %7 = tpu.matmul %5, %6, %cst_6 {dimension_numbers = #tpu.dot_dimension_numbers<[1], [0], [0], [1], [0, 0, 1, 1], [], []>} : vector<4x64xf32>, vector<64x4xf32>, vector<4x4xf32> -> vector<4x4xf32>
    %cst_7 = arith.constant 0.000000e+00 : f32
    %8 = vector.broadcast %cst_7 : f32 to vector<4x4xf32>
    %9 = arith.maximumf %7, %8 : vector<4x4xf32>
    %c0_8 = arith.constant 0 : index
    %c0_9 = arith.constant 0 : index
    %10 = vector.load %arg3[%c0_8, %c0_9] : memref<4x64xf32, #tpu.memory_space<vmem>>, vector<4x64xf32>
    %cst_10 = arith.constant dense<0.000000e+00> : vector<4x64xf32>
    %11 = tpu.matmul %9, %10, %cst_10 {dimension_numbers = #tpu.dot_dimension_numbers<[1], [0], [0], [1], [0, 0, 1, 1], [], []>} : vector<4x4xf32>, vector<4x64xf32>, vector<4x64xf32> -> vector<4x64xf32>
    %12 = vector.extract_strided_slice %11 {offsets = [0, 0], sizes = [2, 64], strides = [1, 1]} : vector<4x64xf32> to vector<2x64xf32>
    %13 = vector.extract_strided_slice %11 {offsets = [2, 0], sizes = [2, 64], strides = [1, 1]} : vector<4x64xf32> to vector<2x64xf32>
    %14 = arith.addf %12, %13 : vector<2x64xf32>
    %15 = arith.negf %14 : vector<2x64xf32>
    %16 = math.exp %15 : vector<2x64xf32>
    %cst_11 = arith.constant 1.000000e+00 : f32
    %17 = vector.broadcast %cst_11 : f32 to vector<2x64xf32>
    %18 = arith.addf %17, %16 : vector<2x64xf32>
    %19 = arith.divf %17, %18 : vector<2x64xf32>
    %20 = vector.shape_cast %19 : vector<2x64xf32> to vector<2x64x1xf32>
    %c0_12 = arith.constant 0 : index
    %c0_13 = arith.constant 0 : index
    %c0_14 = arith.constant 0 : index
    %21 = vector.load %arg1[%c0_12, %c0_13, %c0_14] : memref<2x64x128xf32, #tpu.memory_space<vmem>>, vector<2x64x128xf32>
    %22 = vector.broadcast %20 : vector<2x64x1xf32> to vector<2x64x128xf32>
    %23 = arith.mulf %22, %21 : vector<2x64x128xf32>
    %c0_15 = arith.constant 0 : index
    %c0_16 = arith.constant 0 : index
    %c0_17 = arith.constant 0 : index
    %24 = vector.load %arg4[%c0_15, %c0_16, %c0_17] : memref<2x64x128xf32, #tpu.memory_space<vmem>>, vector<2x64x128xf32>
    tpu.vector_store %arg4[%c0_15, %c0_16, %c0_17], %23 {strides = array<i32>} : memref<2x64x128xf32, #tpu.memory_space<vmem>>, vector<2x64x128xf32>,
    return
  }
  func.func @transform_0(%arg0: i32) -> (i32, i32, i32) {
    %c0_i32 = arith.constant 0 : i32
    %c0_i32_0 = arith.constant 0 : i32
    %c0_i32_1 = arith.constant 0 : i32
    return %arg0, %c0_i32, %c0_i32_0 : i32, i32, i32
  }
  func.func @transform_1(%arg0: i32) -> (i32, i32) {
    %c0_i32 = arith.constant 0 : i32
    %c0_i32_0 = arith.constant 0 : i32
    %c0_i32_1 = arith.constant 0 : i32
    return %c0_i32, %c0_i32_0 : i32, i32
  }
  func.func @transform_2(%arg0: i32) -> (i32, i32) {
    %c0_i32 = arith.constant 0 : i32
    %c0_i32_0 = arith.constant 0 : i32
    %c0_i32_1 = arith.constant 0 : i32
    return %c0_i32, %c0_i32_0 : i32, i32
  }
  func.func @transform_3(%arg0: i32) -> (i32, i32, i32) {
    %c0_i32 = arith.constant 0 : i32
    %c0_i32_0 = arith.constant 0 : i32
    %c0_i32_1 = arith.constant 0 : i32
    return %arg0, %c0_i32, %c0_i32_0 : i32, i32, i32
  }
}

</mosaic_0001>

<llo_original>
// kernel: channel_attention.1
$region0: #{channel_attention.1}
  #allocation0 [shape = 'u32[]', space=smem, size = 0x4, offset = 0x4, fixed_abs, tag = 'smem constant byte address 0x4 - core index']
  #allocation1 [shape = 'u32[144,128]{1,0:T(1,128)}', space=vmem, size = 0x12000, scoped, tag = 'internal scratch']
  %s0 = inlined_call_operand.hbm [shape: f32[2,64,128], index: 0, kind: input, shape index: {}]
  %s1 = inlined_call_operand.vmem [shape: f32[64,4], index: 1, kind: input, shape index: {}]
  %s2 = inlined_call_operand.vmem [shape: f32[4,64], index: 2, kind: input, shape index: {}]
  %s3 = inlined_call_operand.hbm [shape: f32[2,64,128], index: 3, kind: output, shape index: {}]
  %s4 = sld [smem:[#allocation0]]
  $region26: #{channel_attention.1} parent=0
    _
  %s6 = ssub.s32 1, %s4
  %s7 = scalar_select 0, %s6, %s4
  $region1: #{channel_attention.1} parent=0
    #allocation2 [shape = 'u8[65536]{0}', space=vmem, size = 0x10000, scoped, tag = 'input window, operand 0, single buffered']
    #allocation3 [shape = 's32[1]{0}', space=sflag, size = 0x4, scoped, tag = 'scoped memory for channel_attention.1']
    #allocation4 [shape = 's32[1]{0}', space=sflag, size = 0x4, scoped, tag = 'scoped memory for channel_attention.1']
    #allocation5 [shape = 'u8[65536]{0}', space=vmem, size = 0x10000, scoped, tag = 'output window, operand 0, single buffered']
    %8 = vsyncpa [#allocation3], 0
    %9 = vsyncpa [#allocation4], 0
    // Predicated region
    $region2: #{channel_attention.1} parent=1 // pred_check
      _
    $region3: #{channel_attention.1} parent=1 // pred_check_branch
      %11 = sbr.rel (0) target = $region5
    $region4: #{channel_attention.1} parent=1 // pred_region
      %s13 = ssub.s32 2048, 2048
      %14 = vsyncadd [#allocation3], %s13
      %s15 = sshll.u32 [#allocation2], 4
      %s16 = int_to_ptr.vmem [resolvable:$true] %s15
      %21 = dma.hbm_to_vmem [thread:$0]  %s0, 2048, %s16, [#allocation3], 128, 128, 8
    $region5: #{channel_attention.1} parent=1 // pred_fallthru
      _
    // Predicated region
    $region6: #{channel_attention.1} parent=1 // pred_check
      _
    $region7: #{channel_attention.1} parent=1 // pred_check_branch
      %23 = sbr.rel (0) target = $region9
    $region8: #{channel_attention.1} parent=1 // pred_region
      _
    $region9: #{channel_attention.1} parent=1 // pred_fallthru
      _
    // Predicated region
    $region10: #{channel_attention.1} parent=1 // pred_check
      _
    $region11: #{channel_attention.1} parent=1 // pred_check_branch
      %25 = sbr.rel (0) target = $region13
    $region12: #{channel_attention.1} parent=1 // pred_region
      _
    $region13: #{channel_attention.1} parent=1 // pred_fallthru
      _
    // Predicated region
    $region14: #{channel_attention.1} parent=1 // pred_check
      _
    $region15: #{channel_attention.1} parent=1 // pred_check_branch
      %27 = sbr.rel (0) target = $region17
    $region16: #{channel_attention.1} parent=1 // pred_region
      %28 = dma.done [#allocation3], 2048
    $region17: #{channel_attention.1} parent=1 // pred_fallthru
      _
    %v29 = vld [vmem:[#allocation2] sm:$0xff]
    %v30 = vld [vmem:[#allocation2 + $0x8] sm:$0xff]
    %v31 = vld [vmem:[#allocation2 + $0x10] sm:$0xff]
    %v32 = vld [vmem:[#allocation2 + $0x18] sm:$0xff]
    %v33 = vld [vmem:[#allocation2 + $0x20] sm:$0xff]
    %v34 = vld [vmem:[#allocation2 + $0x28] sm:$0xff]
    %v35 = vld [vmem:[#allocation2 + $0x30] sm:$0xff]
    %v36 = vld [vmem:[#allocation2 + $0x38] sm:$0xff]
    %v37 = vld [vmem:[#allocation2 + $0x40] sm:$0xff]
    %v38 = vld [vmem:[#allocation2 + $0x48] sm:$0xff]
    %v39 = vld [vmem:[#allocation2 + $0x50] sm:$0xff]
    %v40 = vld [vmem:[#allocation2 + $0x58] sm:$0xff]
    %v41 = vld [vmem:[#allocation2 + $0x60] sm:$0xff]
    %v42 = vld [vmem:[#allocation2 + $0x68] sm:$0xff]
    %v43 = vld [vmem:[#allocation2 + $0x70] sm:$0xff]
    %v44 = vld [vmem:[#allocation2 + $0x78] sm:$0xff]
    %45 = vadd.xlane.f32.xlu0 %v29
    %v46 = vpop.xlane.xlu0 %45
    %47 = vadd.xlane.f32.xlu0 %v30
    %v48 = vpop.xlane.xlu0 %47
    %49 = vadd.xlane.f32.xlu0 %v31
    %v50 = vpop.xlane.xlu0 %49
    %51 = vadd.xlane.f32.xlu0 %v32
    %v52 = vpop.xlane.xlu0 %51
    %53 = vadd.xlane.f32.xlu0 %v33
    %v54 = vpop.xlane.xlu0 %53
    %55 = vadd.xlane.f32.xlu0 %v34
    %v56 = vpop.xlane.xlu0 %55
    %57 = vadd.xlane.f32.xlu0 %v35
    %v58 = vpop.xlane.xlu0 %57
    %59 = vadd.xlane.f32.xlu0 %v36
    %v60 = vpop.xlane.xlu0 %59
    %61 = vadd.xlane.f32.xlu0 %v37
    %v62 = vpop.xlane.xlu0 %61
    %63 = vadd.xlane.f32.xlu0 %v38
    %v64 = vpop.xlane.xlu0 %63
    %65 = vadd.xlane.f32.xlu0 %v39
    %v66 = vpop.xlane.xlu0 %65
    %67 = vadd.xlane.f32.xlu0 %v40
    %v68 = vpop.xlane.xlu0 %67
    %69 = vadd.xlane.f32.xlu0 %v41
    %v70 = vpop.xlane.xlu0 %69
    %71 = vadd.xlane.f32.xlu0 %v42
    %v72 = vpop.xlane.xlu0 %71
    %73 = vadd.xlane.f32.xlu0 %v43
    %v74 = vpop.xlane.xlu0 %73
    %75 = vadd.xlane.f32.xlu0 %v44
    %v76 = vpop.xlane.xlu0 %75
    %v77 = vmul.f32 %v46, 0.0078125
    %v78 = vmul.f32 %v48, 0.0078125
    %v79 = vmul.f32 %v50, 0.0078125
    %v80 = vmul.f32 %v52, 0.0078125
    %v81 = vmul.f32 %v54, 0.0078125
    %v82 = vmul.f32 %v56, 0.0078125
    %v83 = vmul.f32 %v58, 0.0078125
    %v84 = vmul.f32 %v60, 0.0078125
    %v85 = vmul.f32 %v62, 0.0078125
    %v86 = vmul.f32 %v64, 0.0078125
    %v87 = vmul.f32 %v66, 0.0078125
    %v88 = vmul.f32 %v68, 0.0078125
    %v89 = vmul.f32 %v70, 0.0078125
    %v90 = vmul.f32 %v72, 0.0078125
    %v91 = vmul.f32 %v74, 0.0078125
    %v92 = vmul.f32 %v76, 0.0078125
    %93 = vmax.xlane.f32.xlu0 %v29
    %v94 = vpop.xlane.xlu0 %93
    %95 = vmax.xlane.f32.xlu0 %v30
    %v96 = vpop.xlane.xlu0 %95
    %97 = vmax.xlane.f32.xlu0 %v31
    %v98 = vpop.xlane.xlu0 %97
    %99 = vmax.xlane.f32.xlu0 %v32
    %v100 = vpop.xlane.xlu0 %99
    %101 = vmax.xlane.f32.xlu0 %v33
    %v102 = vpop.xlane.xlu0 %101
    %103 = vmax.xlane.f32.xlu0 %v34
    %v104 = vpop.xlane.xlu0 %103
    %105 = vmax.xlane.f32.xlu0 %v35
    %v106 = vpop.xlane.xlu0 %105
    %107 = vmax.xlane.f32.xlu0 %v36
    %v108 = vpop.xlane.xlu0 %107
    %109 = vmax.xlane.f32.xlu0 %v37
    %v110 = vpop.xlane.xlu0 %109
    %111 = vmax.xlane.f32.xlu0 %v38
    %v112 = vpop.xlane.xlu0 %111
    %113 = vmax.xlane.f32.xlu0 %v39
    %v114 = vpop.xlane.xlu0 %113
    %115 = vmax.xlane.f32.xlu0 %v40
    %v116 = vpop.xlane.xlu0 %115
    %117 = vmax.xlane.f32.xlu0 %v41
    %v118 = vpop.xlane.xlu0 %117
    %119 = vmax.xlane.f32.xlu0 %v42
    %v120 = vpop.xlane.xlu0 %119
    %121 = vmax.xlane.f32.xlu0 %v43
    %v122 = vpop.xlane.xlu0 %121
    %123 = vmax.xlane.f32.xlu0 %v44
    %v124 = vpop.xlane.xlu0 %123
    %v141 = vlaneseq
    %v142 = vand.u32 %v141, 127
    %v143 = vlaneseq
    %v144 = vshrl.u32 %v143, 7
    %v145 = vsub.s32 %v142, %v144
    %v146 = vrot.slane %v77, %v145
    %v147 = vadd.s32 %v142, 4294967288
    %v148 = vlaneseq
    %v149 = vshrl.u32 %v148, 7
    %v150 = vsub.s32 %v147, %v149
    %v151 = vrot.slane %v78, %v150
    %vm152 = vcmask 130112
    %v153 = vsel %vm152, %v151, %v146
    %v154 = vadd.s32 %v142, 4294967280
    %v155 = vlaneseq
    %v156 = vshrl.u32 %v155, 7
    %v157 = vsub.s32 %v154, %v156
    %v158 = vrot.slane %v79, %v157
    %vm159 = vcmask 195712
    %v160 = vsel %vm159, %v158, %v153
    %v161 = vadd.s32 %v142, 4294967272
    %v162 = vlaneseq
    %v163 = vshrl.u32 %v162, 7
    %v164 = vsub.s32 %v161, %v163
    %v165 = vrot.slane %v80, %v164
    %vm166 = vcmask 261312
    %v167 = vsel %vm166, %v165, %v160
    %v168 = vadd.s32 %v142, 4294967264
    %v169 = vlaneseq
    %v170 = vshrl.u32 %v169, 7
    %v171 = vsub.s32 %v168, %v170
    %v172 = vrot.slane %v81, %v171
    %vm173 = vcmask 326912
    %v174 = vsel %vm173, %v172, %v167
    %v175 = vadd.s32 %v142, 4294967256
    %v176 = vlaneseq
    %v177 = vshrl.u32 %v176, 7
    %v178 = vsub.s32 %v175, %v177
    %v179 = vrot.slane %v82, %v178
    %vm180 = vcmask 392512
    %v181 = vsel %vm180, %v179, %v174
    %v182 = vadd.s32 %v142, 4294967248
    %v183 = vlaneseq
    %v184 = vshrl.u32 %v183, 7
    %v185 = vsub.s32 %v182, %v184
    %v186 = vrot.slane %v83, %v185
    %vm187 = vcmask 458112
    %v188 = vsel %vm187, %v186, %v181
    %v189 = vadd.s32 %v142, 4294967240
    %v190 = vlaneseq
    %v191 = vshrl.u32 %v190, 7
    %v192 = vsub.s32 %v189, %v191
    %v193 = vrot.slane %v84, %v192
    %vm194 = vcmask 523712
    %v195 = vsel %vm194, %v193, %v188
    %v196 = vlaneseq
    %v197 = vshrl.u32 %v196, 7
    %v198 = vsub.s32 %v142, %v197
    %v199 = vrot.slane %v85, %v198
    %v200 = vlaneseq
    %v201 = vshrl.u32 %v200, 7
    %v202 = vsub.s32 %v147, %v201
    %v203 = vrot.slane %v86, %v202
    %v204 = vsel %vm152, %v203, %v199
    %v205 = vlaneseq
    %v206 = vshrl.u32 %v205, 7
    %v207 = vsub.s32 %v154, %v206
    %v208 = vrot.slane %v87, %v207
    %v209 = vsel %vm159, %v208, %v204
    %v210 = vlaneseq
    %v211 = vshrl.u32 %v210, 7
    %v212 = vsub.s32 %v161, %v211
    %v213 = vrot.slane %v88, %v212
    %v214 = vsel %vm166, %v213, %v209
    %v215 = vlaneseq
    %v216 = vshrl.u32 %v215, 7
    %v217 = vsub.s32 %v168, %v216
    %v218 = vrot.slane %v89, %v217
    %v219 = vsel %vm173, %v218, %v214
    %v220 = vlaneseq
    %v221 = vshrl.u32 %v220, 7
    %v222 = vsub.s32 %v175, %v221
    %v223 = vrot.slane %v90, %v222
    %v224 = vsel %vm180, %v223, %v219
    %v225 = vlaneseq
    %v226 = vshrl.u32 %v225, 7
    %v227 = vsub.s32 %v182, %v226
    %v228 = vrot.slane %v91, %v227
    %v229 = vsel %vm187, %v228, %v224
    %v230 = vlaneseq
    %v231 = vshrl.u32 %v230, 7
    %v232 = vsub.s32 %v189, %v231
    %v233 = vrot.slane %v92, %v232
    %v234 = vsel %vm194, %v233, %v229
    %vm235 = vcmask 1041409
    %v236 = vsel %vm235, %v234, %v195
    %v254 = vlaneseq
    %v255 = vshrl.u32 %v254, 7
    %v256 = vsub.s32 %v142, %v255
    %v257 = vrot.slane %v94, %v256
    %v258 = vlaneseq
    %v259 = vshrl.u32 %v258, 7
    %v260 = vsub.s32 %v147, %v259
    %v261 = vrot.slane %v96, %v260
    %v262 = vsel %vm152, %v261, %v257
    %v263 = vlaneseq
    %v264 = vshrl.u32 %v263, 7
    %v265 = vsub.s32 %v154, %v264
    %v266 = vrot.slane %v98, %v265
    %v267 = vsel %vm159, %v266, %v262
    %v268 = vlaneseq
    %v269 = vshrl.u32 %v268, 7
    %v270 = vsub.s32 %v161, %v269
    %v271 = vrot.slane %v100, %v270
    %v272 = vsel %vm166, %v271, %v267
    %v273 = vlaneseq
    %v274 = vshrl.u32 %v273, 7
    %v275 = vsub.s32 %v168, %v274
    %v276 = vrot.slane %v102, %v275
    %v277 = vsel %vm173, %v276, %v272
    %v278 = vlaneseq
    %v279 = vshrl.u32 %v278, 7
    %v280 = vsub.s32 %v175, %v279
    %v281 = vrot.slane %v104, %v280
    %v282 = vsel %vm180, %v281, %v277
    %v283 = vlaneseq
    %v284 = vshrl.u32 %v283, 7
    %v285 = vsub.s32 %v182, %v284
    %v286 = vrot.slane %v106, %v285
    %v287 = vsel %vm187, %v286, %v282
    %v288 = vlaneseq
    %v289 = vshrl.u32 %v288, 7
    %v290 = vsub.s32 %v189, %v289
    %v291 = vrot.slane %v108, %v290
    %v292 = vsel %vm194, %v291, %v287
    %v293 = vlaneseq
    %v294 = vshrl.u32 %v293, 7
    %v295 = vsub.s32 %v142, %v294
    %v296 = vrot.slane %v110, %v295
    %v297 = vlaneseq
    %v298 = vshrl.u32 %v297, 7
    %v299 = vsub.s32 %v147, %v298
    %v300 = vrot.slane %v112, %v299
    %v301 = vsel %vm152, %v300, %v296
    %v302 = vlaneseq
    %v303 = vshrl.u32 %v302, 7
    %v304 = vsub.s32 %v154, %v303
    %v305 = vrot.slane %v114, %v304
    %v306 = vsel %vm159, %v305, %v301
    %v307 = vlaneseq
    %v308 = vshrl.u32 %v307, 7
    %v309 = vsub.s32 %v161, %v308
    %v310 = vrot.slane %v116, %v309
    %v311 = vsel %vm166, %v310, %v306
    %v312 = vlaneseq
    %v313 = vshrl.u32 %v312, 7
    %v314 = vsub.s32 %v168, %v313
    %v315 = vrot.slane %v118, %v314
    %v316 = vsel %vm173, %v315, %v311
    %v317 = vlaneseq
    %v318 = vshrl.u32 %v317, 7
    %v319 = vsub.s32 %v175, %v318
    %v320 = vrot.slane %v120, %v319
    %v321 = vsel %vm180, %v320, %v316
    %v322 = vlaneseq
    %v323 = vshrl.u32 %v322, 7
    %v324 = vsub.s32 %v182, %v323
    %v325 = vrot.slane %v122, %v324
    %v326 = vsel %vm187, %v325, %v321
    %v327 = vlaneseq
    %v328 = vshrl.u32 %v327, 7
    %v329 = vsub.s32 %v189, %v328
    %v330 = vrot.slane %v124, %v329
    %v331 = vsel %vm194, %v330, %v326
    %vm332 = vcmask 1043459
    %v333 = vsel %vm332, %v331, %v292
    %vm335 = vcmask 1041408
    %v336 = vsel %vm335, %v236, %v333
    %v337 = vld [vmem:[%s1] sm:$0xff]
    %v338 = vld [vmem:[%s1 + $0x8] sm:$0xff]
    %v339 = vld [vmem:[%s1 + $0x10] sm:$0xff]
    %v340 = vld [vmem:[%s1 + $0x18] sm:$0xff]
    %v341 = vld [vmem:[%s1 + $0x20] sm:$0xff]
    %v342 = vld [vmem:[%s1 + $0x28] sm:$0xff]
    %v343 = vld [vmem:[%s1 + $0x30] sm:$0xff]
    %v344 = vld [vmem:[%s1 + $0x38] sm:$0xff]
    %vm345 = vcmask 523264
    %v347 = vsel %vm345, %v336, 0
    %349 = vmatprep.subr.mxu0 0.0
    %350 = vmatpush1.msra.mxu0 %v337
    %351 = vmatprep.subr.mxu0 0.0
    %352 = vmatpush1.msra.mxu0 %v338
    %353 = vmatprep.subr.mxu0 0.0
    %354 = vmatpush1.msra.mxu0 %v339
    %355 = vmatprep.subr.mxu0 0.0
    %356 = vmatpush1.msra.mxu0 %v340
    %357 = vmatprep.subr.mxu0 0.0
    %358 = vmatpush1.msra.mxu0 %v341
    %359 = vmatprep.subr.mxu0 0.0
    %360 = vmatpush1.msra.mxu0 %v342
    %361 = vmatprep.subr.mxu0 0.0
    %362 = vmatpush1.msra.mxu0 %v343
    %363 = vmatprep.subr.mxu0 0.0
    %364 = vmatpush1.msra.mxu0 %v344
    %365 = vmatprep.subr.mxu0 0.0
    %366 = vmatpush1.msra.mxu0 0.0
    %367 = vmatprep.subr.mxu0 0.0
    %368 = vmatpush1.msra.mxu0 0.0
    %369 = vmatprep.subr.mxu0 0.0
    %370 = vmatpush1.msra.mxu0 0.0
    %371 = vmatprep.subr.mxu0 0.0
    %372 = vmatpush1.msra.mxu0 0.0
    %373 = vmatprep.subr.mxu0 0.0
    %374 = vmatpush1.msra.mxu0 0.0
    %375 = vmatprep.subr.mxu0 0.0
    %376 = vmatpush1.msra.mxu0 0.0
    %377 = vmatprep.subr.mxu0 0.0
    %378 = vmatpush1.msra.mxu0 0.0
    %379 = vmatprep.subr.mxu0 0.0
    %380 = vmatpush1.msra.mxu0 0.0
    %381 = vmatprep.subr.mxu0 0.0
    %382 = vmatpush1.msra.mxu0 0.0
    %383 = vmatprep.subr.mxu0 0.0
    %384 = vmatpush1.msra.mxu0 0.0
    %385 = vmatprep.subr.mxu0 0.0
    %386 = vmatpush1.msra.mxu0 0.0
    %387 = vmatprep.subr.mxu0 0.0
    %388 = vmatpush1.msra.mxu0 0.0
    %389 = vmatprep.subr.mxu0 0.0
    %390 = vmatpush1.msra.mxu0 0.0
    %391 = vmatprep.subr.mxu0 0.0
    %392 = vmatpush1.msra.mxu0 0.0
    %393 = vmatprep.subr.mxu0 0.0
    %394 = vmatpush1.msra.mxu0 0.0
    %395 = vmatprep.subr.mxu0 0.0
    %396 = vmatpush1.msra.mxu0 0.0
    %397 = vmatprep.subr.mxu0 0.0
    %398 = vmatpush1.msra.mxu0 0.0
    %399 = vmatprep.subr.mxu0 0.0
    %400 = vmatpush1.msra.mxu0 0.0
    %401 = vmatprep.subr.mxu0 0.0
    %402 = vmatpush1.msra.mxu0 0.0
    %403 = vmatprep.subr.mxu0 0.0
    %404 = vmatpush1.msra.mxu0 0.0
    %405 = vmatprep.subr.mxu0 0.0
    %406 = vmatpush1.msra.mxu0 0.0
    %407 = vmatprep.subr.mxu0 0.0
    %408 = vmatpush1.msra.mxu0 0.0
    %409 = vmatprep.subr.mxu0 0.0
    %410 = vmatpush1.msra.mxu0 0.0
    %411 = vmatprep.subr.mxu0 0.0
    %412 = vmatpush1.msra.mxu0 0.0
    %413 = vmatprep.mubr.f32.mxu0 0.0
    %414 = vmatmul.mubr.f32.gmra.mrb[0].mxu0 %v347
    %v415 = vpop.f32.mrb[0].mxu0
    %v416 = vadd.f32 0.0, %v415
    %v417 = vpop.f32.mrb[0].mxu0
    %418 = vdwg.mxu0
    %v419 = vmax.f32 %v416, 0.0
    %v420 = vld [vmem:[%s2] sm:$0xf]
    %vm421 = vcmask 31744
    %v423 = vsel %vm421, %v419, 0
    %vm425 = vcmask 1043456
    %v427 = vsel %vm425, %v420, 0
    %429 = vmatprep.subr.mxu0 0.0
    %430 = vmatpush1.msra.mxu0 %v427
    %431 = vmatprep.subr.mxu0 0.0
    %432 = vmatpush1.msra.mxu0 0.0
    %433 = vmatprep.subr.mxu0 0.0
    %434 = vmatpush1.msra.mxu0 0.0
    %435 = vmatprep.subr.mxu0 0.0
    %436 = vmatpush1.msra.mxu0 0.0
    %437 = vmatprep.subr.mxu0 0.0
    %438 = vmatpush1.msra.mxu0 0.0
    %439 = vmatprep.subr.mxu0 0.0
    %440 = vmatpush1.msra.mxu0 0.0
    %441 = vmatprep.subr.mxu0 0.0
    %442 = vmatpush1.msra.mxu0 0.0
    %443 = vmatprep.subr.mxu0 0.0
    %444 = vmatpush1.msra.mxu0 0.0
    %445 = vmatprep.subr.mxu0 0.0
    %446 = vmatpush1.msra.mxu0 0.0
    %447 = vmatprep.subr.mxu0 0.0
    %448 = vmatpush1.msra.mxu0 0.0
    %449 = vmatprep.subr.mxu0 0.0
    %450 = vmatpush1.msra.mxu0 0.0
    %451 = vmatprep.subr.mxu0 0.0
    %452 = vmatpush1.msra.mxu0 0.0
    %453 = vmatprep.subr.mxu0 0.0
    %454 = vmatpush1.msra.mxu0 0.0
    %455 = vmatprep.subr.mxu0 0.0
    %456 = vmatpush1.msra.mxu0 0.0
    %457 = vmatprep.subr.mxu0 0.0
    %458 = vmatpush1.msra.mxu0 0.0
    %459 = vmatprep.subr.mxu0 0.0
    %460 = vmatpush1.msra.mxu0 0.0
    %461 = vmatprep.subr.mxu0 0.0
    %462 = vmatpush1.msra.mxu0 0.0
    %463 = vmatprep.subr.mxu0 0.0
    %464 = vmatpush1.msra.mxu0 0.0
    %465 = vmatprep.subr.mxu0 0.0
    %466 = vmatpush1.msra.mxu0 0.0
    %467 = vmatprep.subr.mxu0 0.0
    %468 = vmatpush1.msra.mxu0 0.0
    %469 = vmatprep.subr.mxu0 0.0
    %470 = vmatpush1.msra.mxu0 0.0
    %471 = vmatprep.subr.mxu0 0.0
    %472 = vmatpush1.msra.mxu0 0.0
    %473 = vmatprep.subr.mxu0 0.0
    %474 = vmatpush1.msra.mxu0 0.0
    %475 = vmatprep.subr.mxu0 0.0
    %476 = vmatpush1.msra.mxu0 0.0
    %477 = vmatprep.subr.mxu0 0.0
    %478 = vmatpush1.msra.mxu0 0.0
    %479 = vmatprep.subr.mxu0 0.0
    %480 = vmatpush1.msra.mxu0 0.0
    %481 = vmatprep.subr.mxu0 0.0
    %482 = vmatpush1.msra.mxu0 0.0
    %483 = vmatprep.subr.mxu0 0.0
    %484 = vmatpush1.msra.mxu0 0.0
    %485 = vmatprep.subr.mxu0 0.0
    %486 = vmatpush1.msra.mxu0 0.0
    %487 = vmatprep.subr.mxu0 0.0
    %488 = vmatpush1.msra.mxu0 0.0
    %489 = vmatprep.subr.mxu0 0.0
    %490 = vmatpush1.msra.mxu0 0.0
    %491 = vmatprep.subr.mxu0 0.0
    %492 = vmatpush1.msra.mxu0 0.0
    %493 = vmatprep.mubr.f32.mxu0 0.0
    %494 = vmatmul.mubr.f32.gmra.mrb[0].mxu0 %v423
    %v495 = vpop.f32.mrb[0].mxu0
    %v496 = vadd.f32 0.0, %v495
    %v497 = vpop.f32.mrb[0].mxu0
    %498 = vdwg.mxu0
    %v500 = vrot.slane %v496, 2
    %v502 = vadd.f32 %v496, %v500
    %v503 = vxor.u32 %v502, 2147483648
    %v504 = vmul.f32 %v503, 1.442695
    %v505 = vpow.pop %v504
    %v506 = vadd.f32 %v505, 1.0
    %v507 = vrcp.pop %v506
    %v508 = vmul.f32 1.0, %v507
    %v509 = vlaneseq
    %v510 = vshrl.u32 %v509, 7
    %v511 = vsub.s32 0, %v510
    %v512 = vrot.slane %v508, %v511
    %514 = vbcast.lane.b32.xlu0 %v512, 256
    %v515 = vpop.permute.xlu0 %514
    %s517 = sor.u32 256, 8
    %518 = vbcast.lane.b32.xlu0 %v512, %s517
    %v519 = vpop.permute.xlu0 %518
    %s521 = sor.u32 256, 16
    %522 = vbcast.lane.b32.xlu0 %v512, %s521
    %v523 = vpop.permute.xlu0 %522
    %s525 = sor.u32 256, 24
    %526 = vbcast.lane.b32.xlu0 %v512, %s525
    %v527 = vpop.permute.xlu0 %526
    %s529 = sor.u32 256, 32
    %530 = vbcast.lane.b32.xlu0 %v512, %s529
    %v531 = vpop.permute.xlu0 %530
    %s533 = sor.u32 256, 40
    %534 = vbcast.lane.b32.xlu0 %v512, %s533
    %v535 = vpop.permute.xlu0 %534
    %s537 = sor.u32 256, 48
    %538 = vbcast.lane.b32.xlu0 %v512, %s537
    %v539 = vpop.permute.xlu0 %538
    %s541 = sor.u32 256, 56
    %542 = vbcast.lane.b32.xlu0 %v512, %s541
    %v543 = vpop.permute.xlu0 %542
    %v544 = vlaneseq
    %v545 = vshrl.u32 %v544, 7
    %v546 = vsub.s32 1, %v545
    %v547 = vrot.slane %v508, %v546
    %549 = vbcast.lane.b32.xlu0 %v547, 256
    %v550 = vpop.permute.xlu0 %549
    %s552 = sor.u32 256, 8
    %553 = vbcast.lane.b32.xlu0 %v547, %s552
    %v554 = vpop.permute.xlu0 %553
    %s556 = sor.u32 256, 16
    %557 = vbcast.lane.b32.xlu0 %v547, %s556
    %v558 = vpop.permute.xlu0 %557
    %s560 = sor.u32 256, 24
    %561 = vbcast.lane.b32.xlu0 %v547, %s560
    %v562 = vpop.permute.xlu0 %561
    %s564 = sor.u32 256, 32
    %565 = vbcast.lane.b32.xlu0 %v547, %s564
    %v566 = vpop.permute.xlu0 %565
    %s568 = sor.u32 256, 40
    %569 = vbcast.lane.b32.xlu0 %v547, %s568
    %v570 = vpop.permute.xlu0 %569
    %s572 = sor.u32 256, 48
    %573 = vbcast.lane.b32.xlu0 %v547, %s572
    %v574 = vpop.permute.xlu0 %573
    %s576 = sor.u32 256, 56
    %577 = vbcast.lane.b32.xlu0 %v547, %s576
    %v578 = vpop.permute.xlu0 %577
    %v579 = vmul.f32 %v515, %v29
    %v580 = vmul.f32 %v519, %v30
    %v581 = vmul.f32 %v523, %v31
    %v582 = vmul.f32 %v527, %v32
    %v583 = vmul.f32 %v531, %v33
    %v584 = vmul.f32 %v535, %v34
    %v585 = vmul.f32 %v539, %v35
    %v586 = vmul.f32 %v543, %v36
    %v587 = vmul.f32 %v550, %v37
    %v588 = vmul.f32 %v554, %v38
    %v589 = vmul.f32 %v558, %v39
    %v590 = vmul.f32 %v562, %v40
    %v591 = vmul.f32 %v566, %v41
    %v592 = vmul.f32 %v570, %v42
    %v593 = vmul.f32 %v574, %v43
    %v594 = vmul.f32 %v578, %v44
    %595 = vst [vmem:[#allocation5] sm:$0xff] %v579
    %596 = vst [vmem:[#allocation5 + $0x8] sm:$0xff] %v580
    %597 = vst [vmem:[#allocation5 + $0x10] sm:$0xff] %v581
    %598 = vst [vmem:[#allocation5 + $0x18] sm:$0xff] %v582
    %599 = vst [vmem:[#allocation5 + $0x20] sm:$0xff] %v583
    %600 = vst [vmem:[#allocation5 + $0x28] sm:$0xff] %v584
    %601 = vst [vmem:[#allocation5 + $0x30] sm:$0xff] %v585
    %602 = vst [vmem:[#allocation5 + $0x38] sm:$0xff] %v586
    %603 = vst [vmem:[#allocation5 + $0x40] sm:$0xff] %v587
    %604 = vst [vmem:[#allocation5 + $0x48] sm:$0xff] %v588
    %605 = vst [vmem:[#allocation5 + $0x50] sm:$0xff] %v589
    %606 = vst [vmem:[#allocation5 + $0x58] sm:$0xff] %v590
    %607 = vst [vmem:[#allocation5 + $0x60] sm:$0xff] %v591
    %608 = vst [vmem:[#allocation5 + $0x68] sm:$0xff] %v592
    %609 = vst [vmem:[#allocation5 + $0x70] sm:$0xff] %v593
    %610 = vst [vmem:[#allocation5 + $0x78] sm:$0xff] %v594
    // Predicated region
    $region18: #{channel_attention.1} parent=1 // pred_check
      _
    $region19: #{channel_attention.1} parent=1 // pred_check_branch
      %612 = sbr.rel (0) target = $region21
    $region20: #{channel_attention.1} parent=1 // pred_region
      %s614 = ssub.s32 2048, 2048
      %615 = vsyncadd [#allocation4], %s614
      %s616 = sshll.u32 [#allocation5], 4
      %s617 = int_to_ptr.vmem [resolvable:$true] %s616
      %622 = dma.vmem_to_hbm [thread:$0]  %s617, 2048, %s3, [#allocation4], 128, 128, 8
    $region21: #{channel_attention.1} parent=1 // pred_fallthru
      _
    // Predicated region
    $region22: #{channel_attention.1} parent=1 // pred_check
      _
    $region23: #{channel_attention.1} parent=1 // pred_check_branch
      %624 = sbr.rel (0) target = $region25
    $region24: #{channel_attention.1} parent=1 // pred_region
      %625 = dma.done [#allocation4], 2048
    $region25: #{channel_attention.1} parent=1 // pred_fallthru
      _
    %626 = vsyncpa [#allocation3], 1
    %627 = vsyncpa [#allocation4], 1

</llo_original>
